<compile_context>
chip_gen: v6e
topology: v6e:2x2x1
jax: 0.10.0
libtpu: 0.0.40
codegen_flags: <defaults>
</compile_context>

<pallas_src>
import jax
import jax.numpy as jnp
from jax import lax
from jax.experimental import pallas as pl
from jax.experimental.pallas import tpu as pltpu

_NEG_LARGE = -1e30  # finite "-inf" for padded vocab columns (avoids inf/NaN edge cases)


def _round_up(x, m):
    return ((x + m - 1) // m) * m


def _tpu_vmem_bytes():
    try:
        return int(pltpu.get_tpu_info().vmem_capacity_bytes)
    except Exception:
        return 64 * 1024 * 1024  # conservative (v7x-sized VMEM)


def _default_row_tile():
    # Arithmetic intensity on the re-streamed weight is exactly `tr` flops/byte, so the
    # row tile is a per-generation choice: ~240 f/B suffices on v5e, ~650 on v6e, ~310 on v7x.
    try:
        kind = jax.devices()[0].device_kind.lower()
    except Exception:
        kind = ""
    if "v5e" in kind or "v5 lite" in kind or "v5lite" in kind:
        return 256
    if _tpu_vmem_bytes() >= 100 * 1024 * 1024:
        return 512   # v6e / v5p class: 128 MiB VMEM, weight streaming needs the bigger tile
    return 256       # v7x class: 64 MiB VMEM, high HBM BW -> 256 is near the balance point


def _vmem_estimate(tr, tv, H, Vp, cd_size, out_size):
    h_lane = _round_up(H, 128)
    h_sub = _round_up(H, 16)
    return (2 * tr * h_lane * cd_size      # double-buffered x tile
            + 2 * h_sub * tv * cd_size     # double-buffered weight tile
            + 2 * 8 * tv * 4               # double-buffered bias tile (sublane-padded)
            + 2 * tr * Vp * out_size       # resident output block + writeback buffer
            + 2 * tr * 128 * 4)            # running max / sum-exp scratch (lane-padded)


def _make_mlm_kernel(nj, tv):
    """nj = number of vocab tiles, tv = vocab tile width (static Python ints)."""

    def kernel(x_ref, w_ref, b_ref, o_ref, m_ref, l_ref):
        # x_ref: (TR, H) cd; w_ref: (H, TV) cd; b_ref: (1, TV) f32
        # o_ref: (TR, Vp) out dtype -- resident across the vocab grid axis
        # m_ref / l_ref: (TR, 1) f32 running max / running sum-exp
        j = pl.program_id(1)

        @pl.when(j == 0)
        def _init():
            m_ref[...] = jnp.full(m_ref.shape, -jnp.inf, dtype=m_ref.dtype)
            l_ref[...] = jnp.zeros(l_ref.shape, dtype=l_ref.dtype)

        # logits tile = x @ W[:, j*tv:(j+1)*tv] + b  (contract H on lhs-last/rhs-first:
        # no per-step transpose of the weight tile).
        logits = lax.dot_general(
            x_ref[...], w_ref[...],
            dimension_numbers=(((1,), (0,)), ((), ())),
            preferred_element_type=jnp.float32,
        ) + b_ref[...]

        # Online logsumexp update (all f32).
        m_prev = m_ref[...]
        m_new = jnp.maximum(m_prev, jnp.max(logits, axis=-1, keepdims=True))
        l_ref[...] = (l_ref[...] * jnp.exp(m_prev - m_new)
                      + jnp.sum(jnp.exp(logits - m_new), axis=-1, keepdims=True))
        m_ref[...] = m_new

        if nj == 1:
            # Single vocab tile: lse is already final -> fuse the subtraction, one store.
            lse = m_ref[...] + jnp.log(l_ref[...])
            o_ref[...] = (logits - lse).astype(o_ref.dtype)
        else:
            # Write raw logits straight into the resident output slab (lane-dense,
            # 128-aligned dynamic slice; no separate f32 stash).
            off = pl.multiple_of(j * tv, 128)
            o_ref[:, pl.ds(off, tv)] = logits.astype(o_ref.dtype)

            @pl.when(j == nj - 1)
            def _finalize():
                lse = m_ref[...] + jnp.log(l_ref[...])   # (TR, 1) f32

                def body(jj, carry):
                    o = pl.multiple_of(jj * tv, 128)
                    blk = o_ref[:, pl.ds(o, tv)].astype(jnp.float32)
                    o_ref[:, pl.ds(o, tv)] = (blk - lse).astype(o_ref.dtype)
                    return carry

                lax.fori_loop(0, nj, body, 0)

    return kernel


def masked_language_model(x, weight, bias, *, row_tile=None, v_tile=1024,
                          compute_dtype=jnp.bfloat16):
    """x: [B, S, H]; weight: [V, H] (nn.Linear layout); bias: [V] -> log-probs [B, S, V]."""
    B, S, H = x.shape
    V, H_w = weight.shape
    assert H == H_w, "weight must be [vocab, hidden]"
    rows = B * S
    out_dtype = x.dtype
    cd = compute_dtype if compute_dtype is not None else x.dtype
    cd_size = jnp.dtype(cd).itemsize
    out_size = jnp.dtype(out_dtype).itemsize

    # --- vocab tiling: tv is a multiple of 128; V is padded up to a multiple of tv ---
    v128 = _round_up(V, 128)
    tv = min(max(128, (v_tile // 128) * 128), v128)
    Vp = _round_up(V, tv)
    nj = Vp // tv

    # --- row tiling (multiple of 16 so bf16 sublane packing stays legal) ---
    if row_tile is None:
        row_tile = _default_row_tile()
    tr = max(16, min(_round_up(row_tile, 16), _round_up(rows, 16)))

    # --- generation-aware VMEM budget: shrink tiles until ~80% of capacity fits,
    #     then derive the scoped limit from the estimate (never the full capacity) ---
    vmem_cap = _tpu_vmem_bytes()
    budget = int(0.80 * vmem_cap)
    while _vmem_estimate(tr, tv, H, Vp, cd_size, out_size) > budget and tr > 64:
        tr = max(64, tr // 2)
    while _vmem_estimate(tr, tv, H, Vp, cd_size, out_size) > budget and tv > 256:
        tv = max(256, ((tv // 2) // 128) * 128)
        Vp = _round_up(V, tv)
        nj = Vp // tv

    padded_rows = _round_up(rows, tr)
    ni = padded_rows // tr
    # v7x has 2 TensorCores: give the "parallel" row axis >= 2 tiles when worthwhile.
    if ni == 1 and rows >= 128:
        tr = _round_up((rows + 1) // 2, 16)
        padded_rows = _round_up(rows, tr)
        ni = padded_rows // tr

    vmem_est = _vmem_estimate(tr, tv, H, Vp, cd_size, out_size)
    vmem_limit = int(min(0.85 * vmem_cap, max(32 * 1024 * 1024, 1.25 * vmem_est)))

    # --- operands ---
    # TODO(synk): in a real model store the parameter as [H, Vp] in compute dtype so this
    # one-time transpose/pad/cast is off the per-call path (here it is a tiny XLA prologue).
    w_hv = weight.astype(cd).T                                   # [H, V]
    b2d = bias.reshape(1, V).astype(jnp.float32)
    if Vp != V:
        w_hv = jnp.pad(w_hv, ((0, 0), (0, Vp - V)))
        b2d = jnp.pad(b2d, ((0, 0), (0, Vp - V)), constant_values=_NEG_LARGE)

    x2d = x.reshape(rows, H).astype(cd)
    if padded_rows != rows:
        x2d = jnp.pad(x2d, ((0, padded_rows - rows), (0, 0)))

    kernel = _make_mlm_kernel(nj, tv)

    out2d = pl.pallas_call(
        kernel,
        out_shape=jax.ShapeDtypeStruct((padded_rows, Vp), out_dtype),
        grid_spec=pltpu.PrefetchScalarGridSpec(
            num_scalar_prefetch=0,
            grid=(ni, nj),                                      # rows parallel, vocab (reduction) last
            in_specs=[
                pl.BlockSpec((tr, H), lambda i, j: (i, 0)),     # x tile (constant across j)
                pl.BlockSpec((H, tv), lambda i, j: (0, j)),     # weight tile [H, TV]
                pl.BlockSpec((1, tv), lambda i, j: (0, j)),     # bias tile
            ],
            out_specs=pl.BlockSpec((tr, Vp), lambda i, j: (i, 0)),  # resident across j
            scratch_shapes=[
                pltpu.VMEM((tr, 1), jnp.float32),               # running max
                pltpu.VMEM((tr, 1), jnp.float32),               # running sum-exp
            ],
        ),
        compiler_params=pltpu.CompilerParams(
            dimension_semantics=("parallel", "arbitrary"),
            vmem_limit_bytes=vmem_limit,
        ),
    )(x2d, w_hv, b2d)

    out2d = out2d[:rows, :V]
    return out2d.reshape(B, S, V)


def _check(out, x, weight, bias, tight=2e-4, loose=5e-2):
    # Reference consistent with the kernel's compute path (bf16 MXU inputs, f32 accumulation,
    # f32 log-softmax) -> tight tolerance.
    logits_ref = lax.dot_general(
        x.astype(jnp.bfloat16), weight.astype(jnp.bfloat16),
        dimension_numbers=(((2,), (1,)), ((), ())),
        preferred_element_type=jnp.float32,
    ) + bias
    ref = jax.nn.log_softmax(logits_ref, axis=-1)
    assert jnp.allclose(out, ref, atol=tight, rtol=tight), "mismatch vs bf16-consistent reference"
    # Full-f32 module semantics (loose tolerance due to bf16 MXU inputs).
    ref_f32 = jax.nn.log_softmax(x @ weight.T + bias, axis=-1)
    assert jnp.allclose(out, ref_f32, atol=loose, rtol=loose), "mismatch vs f32 reference"


if __name__ == "__main__":
    key = jax.random.PRNGKey(0)

    # Test 1: shapes consistent with the module: batch=2, seq=8, hidden=32, vocab=128.
    B, S, H, V = 2, 8, 32, 128
    kx, kw, kb, key = jax.random.split(key, 4)
    x = jax.random.normal(kx, (B, S, H), dtype=jnp.float32)
    bound = 1.0 / (H ** 0.5)
    weight = jax.random.uniform(kw, (V, H), jnp.float32, minval=-bound, maxval=bound)
    bias = jax.random.uniform(kb, (V,), jnp.float32, minval=-bound, maxval=bound)

    out = masked_language_model(x, weight, bias)
    out = jax.block_until_ready(out)
    assert out.shape == (B, S, V)
    _check(out, x, weight, bias)

    # Test 2: odd vocab / odd rows -> exercises vocab padding (-inf-like bias) and row padding.
    B2, S2, H2, V2 = 2, 5, 48, 200
    kx, kw, kb, key = jax.random.split(key, 4)
    x2 = jax.random.normal(kx, (B2, S2, H2), dtype=jnp.float32)
    bound2 = 1.0 / (H2 ** 0.5)
    weight2 = jax.random.uniform(kw, (V2, H2), jnp.float32, minval=-bound2, maxval=bound2)
    bias2 = jax.random.uniform(kb, (V2,), jnp.float32, minval=-bound2, maxval=bound2)

    out2 = masked_language_model(x2, weight2, bias2)
    out2 = jax.block_until_ready(out2)
    assert out2.shape == (B2, S2, V2)
    _check(out2, x2, weight2, bias2)

    print("KERNEL_OK")
</pallas_src>

<mosaic_0001>
module attributes {stable_mosaic.version = 11 : i64} {
  func.func @kernel(%arg0: i32, %arg1: i32, %arg2: memref<16x32xbf16, #tpu.memory_space<vmem>>, %arg3: memref<32x128xbf16, #tpu.memory_space<vmem>>, %arg4: memref<1x128xf32, #tpu.memory_space<vmem>>, %arg5: memref<16x128xf32, #tpu.memory_space<vmem>>, %arg6: memref<16x1xf32, #tpu.memory_space<vmem>>, %arg7: memref<16x1xf32, #tpu.memory_space<vmem>>) attributes {dimension_semantics = [#tpu.dimension_semantics<parallel>, #tpu.dimension_semantics<arbitrary>], iteration_bounds = array<i64: 1, 1>, scalar_prefetch = 0 : i64, scratch_operands = 2 : i64, tpu.core_type = #tpu.core_type<tc>, window_params = [{transform_indices = @transform_0, window_bounds = array<i64: 16, 32>}, {transform_indices = @transform_1, window_bounds = array<i64: 32, 128>}, {transform_indices = @transform_2, window_bounds = array<i64: 1, 128>}, {transform_indices = @transform_3, window_bounds = array<i64: 16, 128>}]} {
    %c0_i32 = arith.constant 0 : i32
    %0 = arith.cmpi eq, %arg1, %c0_i32 : i32
    %1 = arith.extui %0 : i1 to i32
    %c0_i32_0 = arith.constant 0 : i32
    %2 = arith.cmpi ne, %1, %c0_i32_0 : i32
    scf.if %2 {
      %cst_22 = arith.constant 0xFF800000 : f32
      %32 = vector.broadcast %cst_22 : f32 to vector<16x1xf32>
      %c0_23 = arith.constant 0 : index
      %c0_24 = arith.constant 0 : index
      %33 = vector.load %arg6[%c0_23, %c0_24] : memref<16x1xf32, #tpu.memory_space<vmem>>, vector<16x1xf32>
      tpu.vector_store %arg6[%c0_23, %c0_24], %32 {strides = array<i32>} : memref<16x1xf32, #tpu.memory_space<vmem>>, vector<16x1xf32>,
      %cst_25 = arith.constant 0.000000e+00 : f32
      %34 = vector.broadcast %cst_25 : f32 to vector<16x1xf32>
      %c0_26 = arith.constant 0 : index
      %c0_27 = arith.constant 0 : index
      %35 = vector.load %arg7[%c0_26, %c0_27] : memref<16x1xf32, #tpu.memory_space<vmem>>, vector<16x1xf32>
      tpu.vector_store %arg7[%c0_26, %c0_27], %34 {strides = array<i32>} : memref<16x1xf32, #tpu.memory_space<vmem>>, vector<16x1xf32>,
    } else {
    }
    %c0 = arith.constant 0 : index
    %c0_1 = arith.constant 0 : index
    %3 = vector.load %arg2[%c0, %c0_1] : memref<16x32xbf16, #tpu.memory_space<vmem>>, vector<16x32xbf16>
    %c0_2 = arith.constant 0 : index
    %c0_3 = arith.constant 0 : index
    %4 = vector.load %arg3[%c0_2, %c0_3] : memref<32x128xbf16, #tpu.memory_space<vmem>>, vector<32x128xbf16>
    %cst = arith.constant dense<0.000000e+00> : vector<16x128xf32>
    %5 = tpu.matmul %3, %4, %cst {dimension_numbers = #tpu.dot_dimension_numbers<[1], [0], [0], [1], [0, 0, 1, 1], [], []>} : vector<16x32xbf16>, vector<32x128xbf16>, vector<16x128xf32> -> vector<16x128xf32>
    %c0_4 = arith.constant 0 : index
    %c0_5 = arith.constant 0 : index
    %6 = vector.load %arg4[%c0_4, %c0_5] : memref<1x128xf32, #tpu.memory_space<vmem>>, vector<1x128xf32>
    %7 = vector.broadcast %6 : vector<1x128xf32> to vector<16x128xf32>
    %8 = arith.addf %5, %7 : vector<16x128xf32>
    %c0_6 = arith.constant 0 : index
    %c0_7 = arith.constant 0 : index
    %9 = vector.load %arg6[%c0_6, %c0_7] : memref<16x1xf32, #tpu.memory_space<vmem>>, vector<16x1xf32>
    %cst_8 = arith.constant dense<0xFF800000> : vector<16xf32>
    %10 = vector.multi_reduction <maximumf>, %8, %cst_8 [1] : vector<16x128xf32> to vector<16xf32>
    %11 = vector.shape_cast %10 : vector<16xf32> to vector<16x1xf32>
    %12 = arith.maximumf %9, %11 : vector<16x1xf32>
    %c0_9 = arith.constant 0 : index
    %c0_10 = arith.constant 0 : index
    %13 = vector.load %arg7[%c0_9, %c0_10] : memref<16x1xf32, #tpu.memory_space<vmem>>, vector<16x1xf32>
    %14 = arith.subf %9, %12 : vector<16x1xf32>
    %15 = math.exp %14 : vector<16x1xf32>
    %16 = arith.mulf %13, %15 : vector<16x1xf32>
    %17 = vector.broadcast %12 : vector<16x1xf32> to vector<16x128xf32>
    %18 = arith.subf %8, %17 : vector<16x128xf32>
    %19 = math.exp %18 : vector<16x128xf32>
    %cst_11 = arith.constant dense<0.000000e+00> : vector<16xf32>
    %20 = vector.multi_reduction <add>, %19, %cst_11 [1] : vector<16x128xf32> to vector<16xf32>
    %21 = vector.shape_cast %20 : vector<16xf32> to vector<16x1xf32>
    %22 = arith.addf %16, %21 : vector<16x1xf32>
    %c0_12 = arith.constant 0 : index
    %c0_13 = arith.constant 0 : index
    %23 = vector.load %arg7[%c0_12, %c0_13] : memref<16x1xf32, #tpu.memory_space<vmem>>, vector<16x1xf32>
    tpu.vector_store %arg7[%c0_12, %c0_13], %22 {strides = array<i32>} : memref<16x1xf32, #tpu.memory_space<vmem>>, vector<16x1xf32>,
    %c0_14 = arith.constant 0 : index
    %c0_15 = arith.constant 0 : index
    %24 = vector.load %arg6[%c0_14, %c0_15] : memref<16x1xf32, #tpu.memory_space<vmem>>, vector<16x1xf32>
    tpu.vector_store %arg6[%c0_14, %c0_15], %12 {strides = array<i32>} : memref<16x1xf32, #tpu.memory_space<vmem>>, vector<16x1xf32>,
    %c0_16 = arith.constant 0 : index
    %c0_17 = arith.constant 0 : index
    %25 = vector.load %arg6[%c0_16, %c0_17] : memref<16x1xf32, #tpu.memory_space<vmem>>, vector<16x1xf32>
    %c0_18 = arith.constant 0 : index
    %c0_19 = arith.constant 0 : index
    %26 = vector.load %arg7[%c0_18, %c0_19] : memref<16x1xf32, #tpu.memory_space<vmem>>, vector<16x1xf32>
    %27 = math.log %26 : vector<16x1xf32>
    %28 = arith.addf %25, %27 : vector<16x1xf32>
    %29 = vector.broadcast %28 : vector<16x1xf32> to vector<16x128xf32>
    %30 = arith.subf %8, %29 : vector<16x128xf32>
    %c0_20 = arith.constant 0 : index
    %c0_21 = arith.constant 0 : index
    %31 = vector.load %arg5[%c0_20, %c0_21] : memref<16x128xf32, #tpu.memory_space<vmem>>, vector<16x128xf32>
    tpu.vector_store %arg5[%c0_20, %c0_21], %30 {strides = array<i32>} : memref<16x128xf32, #tpu.memory_space<vmem>>, vector<16x128xf32>,
    return
  }
  func.func @transform_0(%arg0: i32, %arg1: i32) -> (i32, i32) {
    %c0_i32 = arith.constant 0 : i32
    %c0_i32_0 = arith.constant 0 : i32
    return %arg0, %c0_i32 : i32, i32
  }
  func.func @transform_1(%arg0: i32, %arg1: i32) -> (i32, i32) {
    %c0_i32 = arith.constant 0 : i32
    %c0_i32_0 = arith.constant 0 : i32
    return %c0_i32, %arg1 : i32, i32
  }
  func.func @transform_2(%arg0: i32, %arg1: i32) -> (i32, i32) {
    %c0_i32 = arith.constant 0 : i32
    %c0_i32_0 = arith.constant 0 : i32
    return %c0_i32, %arg1 : i32, i32
  }
  func.func @transform_3(%arg0: i32, %arg1: i32) -> (i32, i32) {
    %c0_i32 = arith.constant 0 : i32
    %c0_i32_0 = arith.constant 0 : i32
    return %arg0, %c0_i32 : i32, i32
  }
}

</mosaic_0001>

<llo_original>
// kernel: tpu_custom_call.1
$region0: #{tpu_custom_call.1}
  #allocation0 [shape = 'u32[]', space=smem, size = 0x4, offset = 0x4, fixed_abs, tag = 'smem constant byte address 0x4 - core index']
  #allocation1 [shape = 'u32[144,128]{1,0:T(1,128)}', space=vmem, size = 0x12000, scoped, tag = 'internal scratch']
  #allocation2 [shape = 'f32[16,1]{1,0:T(8,128)}', space=vmem, size = 0x2000, scoped, tag = 'scratch operand']
  #allocation3 [shape = 'f32[16,1]{1,0:T(8,128)}', space=vmem, size = 0x2000, scoped, tag = 'scratch operand']
  %s0 = inlined_call_operand.hbm [shape: bf16[16,32], index: 0, kind: input, shape index: {}]
  %s1 = inlined_call_operand.hbm [shape: bf16[32,128], index: 1, kind: input, shape index: {}]
  %s2 = inlined_call_operand.vmem [shape: f32[1,128], index: 2, kind: input, shape index: {}]
  %s3 = inlined_call_operand.hbm [shape: f32[16,128], index: 3, kind: output, shape index: {}]
  %s4 = sld [smem:[#allocation0]]
  $region34: #{tpu_custom_call.1} parent=0
    _
  %s6 = ssub.s32 1, %s4
  %s7 = scalar_select 0, %s6, %s4
  $region1: #{tpu_custom_call.1} parent=0
    #allocation4 [shape = 'u8[4096]{0}', space=vmem, size = 0x1000, scoped, tag = 'input window, operand 0, single buffered']
    #allocation5 [shape = 's32[1]{0}', space=sflag, size = 0x4, scoped, tag = 'scoped memory for tpu_custom_call.1']
    #allocation6 [shape = 's32[1]{0}', space=sflag, size = 0x4, scoped, tag = 'scoped memory for tpu_custom_call.1']
    #allocation7 [shape = 'u8[8192]{0}', space=vmem, size = 0x2000, scoped, tag = 'input window, operand 1, single buffered']
    #allocation8 [shape = 's32[1]{0}', space=sflag, size = 0x4, scoped, tag = 'scoped memory for tpu_custom_call.1']
    #allocation9 [shape = 'u8[8192]{0}', space=vmem, size = 0x2000, scoped, tag = 'output window, operand 0, single buffered']
    %8 = vsyncpa [#allocation5], 0
    %9 = vsyncpa [#allocation8], 0
    %10 = vsyncpa [#allocation6], 0
    // Predicated region
    $region2: #{tpu_custom_call.1} parent=1 // pred_check
      _
    $region3: #{tpu_custom_call.1} parent=1 // pred_check_branch
      %12 = sbr.rel (0) target = $region5
    $region4: #{tpu_custom_call.1} parent=1 // pred_region
      %s14 = ssub.s32 128, 128
      %15 = vsyncadd [#allocation5], %s14
      %s16 = sshll.u32 [#allocation4], 4
      %s17 = int_to_ptr.vmem [resolvable:$true] %s16
      %22 = dma.hbm_to_vmem [thread:$0]  %s0, 128, %s17, [#allocation5], 64, 64, 4
    $region5: #{tpu_custom_call.1} parent=1 // pred_fallthru
      _
    // Predicated region
    $region6: #{tpu_custom_call.1} parent=1 // pred_check
      _
    $region7: #{tpu_custom_call.1} parent=1 // pred_check_branch
      %24 = sbr.rel (0) target = $region9
    $region8: #{tpu_custom_call.1} parent=1 // pred_region
      %s26 = ssub.s32 256, 256
      %27 = vsyncadd [#allocation8], %s26
      %s28 = sshll.u32 [#allocation7], 4
      %s29 = int_to_ptr.vmem [resolvable:$true] %s28
      %34 = dma.hbm_to_vmem [thread:$0]  %s1, 256, %s29, [#allocation8], 64, 64, 4
    $region9: #{tpu_custom_call.1} parent=1 // pred_fallthru
      _
    // Predicated region
    $region10: #{tpu_custom_call.1} parent=1 // pred_check
      _
    $region11: #{tpu_custom_call.1} parent=1 // pred_check_branch
      %36 = sbr.rel (0) target = $region13
    $region12: #{tpu_custom_call.1} parent=1 // pred_region
      _
    $region13: #{tpu_custom_call.1} parent=1 // pred_fallthru
      _
    // Predicated region
    $region14: #{tpu_custom_call.1} parent=1 // pred_check
      _
    $region15: #{tpu_custom_call.1} parent=1 // pred_check_branch
      %38 = sbr.rel (0) target = $region17
    $region16: #{tpu_custom_call.1} parent=1 // pred_region
      %39 = dma.done [#allocation5], 128
    $region17: #{tpu_custom_call.1} parent=1 // pred_fallthru
      _
    // Predicated region
    $region18: #{tpu_custom_call.1} parent=1 // pred_check
      _
    $region19: #{tpu_custom_call.1} parent=1 // pred_check_branch
      %41 = sbr.rel (0) target = $region21
    $region20: #{tpu_custom_call.1} parent=1 // pred_region
      %42 = dma.done [#allocation8], 256
    $region21: #{tpu_custom_call.1} parent=1 // pred_fallthru
      _
    %p44 = scmp.eq.s32.totalorder 0, 0
    // Predicated region
    $region22: #{tpu_custom_call.1} parent=1 // pred_check
      %p45 = pneg %p44
    $region23: #{tpu_custom_call.1} parent=1 // pred_check_branch
      %47 = sbr.rel (%p45) target = $region25
    $region24: #{tpu_custom_call.1} parent=1 // pred_region
      %vm48 = vcmask 7168
      %49 = vst.msk [vmem:[#allocation2] sm:$0xff] %vm48, -inf
      %50 = vst.msk [vmem:[#allocation2 + $0x8] sm:$0xff] %vm48, -inf
      %51 = vst.msk [vmem:[#allocation3] sm:$0xff] %vm48, 0.0
      %52 = vst.msk [vmem:[#allocation3 + $0x8] sm:$0xff] %vm48, 0.0
    $region25: #{tpu_custom_call.1} parent=1 // pred_fallthru
      _
    %v53 = vld [vmem:[#allocation4] sm:$0xf]
    %v54 = vld [vmem:[#allocation4 + $0x4] sm:$0xf]
    %v55 = vld [vmem:[#allocation7] sm:$0xf]
    %v56 = vld [vmem:[#allocation7 + $0x4] sm:$0xf]
    %v57 = vld [vmem:[#allocation7 + $0x8] sm:$0xf]
    %v58 = vld [vmem:[#allocation7 + $0xc] sm:$0xf]
    %v59 = vld [vmem:[%s2] sm:$0x1]
    %v61 = vlaneseq
    %v62 = vshrl.u32 %v61, 7
    %v63 = vsub.s32 0, %v62
    %v64 = vrot.slane %v59, %v63
    %v68 = vunpack.c.l.b16 %v53
    %v69 = vunpack.c.l.b16 %v54
    %v70 = vpack.c.b16 %v69, %v68
    %v75 = vunpack.c.l.b16 %v55
    %v76 = vunpack.c.l.b16 %v56
    %v77 = vunpack.c.l.b16 %v57
    %v78 = vunpack.c.l.b16 %v58
    %v79 = vpack.c.b16 %v76, %v75
    %v80 = vpack.c.b16 %v78, %v77
    %vm83 = vcmask 261120
    %v85 = vsel %vm83, %v70, 0
    %87 = vmatprep.subr.bf16.mxu0 0
    %88 = vmatpush1.bf16.msra.mxu0 0
    %89 = vmatprep.subr.bf16.mxu0 0
    %90 = vmatpush1.bf16.msra.mxu0 0
    %91 = vmatprep.subr.bf16.mxu0 0
    %92 = vmatpush1.bf16.msra.mxu0 0
    %93 = vmatprep.subr.bf16.mxu0 0
    %94 = vmatpush1.bf16.msra.mxu0 0
    %95 = vmatprep.subr.bf16.mxu0 0
    %96 = vmatpush1.bf16.msra.mxu0 0
    %97 = vmatprep.subr.bf16.mxu0 0
    %98 = vmatpush1.bf16.msra.mxu0 0
    %99 = vmatprep.subr.bf16.mxu0 0
    %100 = vmatpush1.bf16.msra.mxu0 %v80
    %101 = vmatprep.subr.bf16.mxu0 0
    %102 = vmatpush1.bf16.msra.mxu0 %v79
    %103 = vmatprep.subr.bf16.mxu0 0
    %104 = vmatpush2.bf16.msra.mxu0 0
    %105 = vmatprep.subr.bf16.mxu0 0
    %106 = vmatpush2.bf16.msra.mxu0 0
    %107 = vmatprep.subr.bf16.mxu0 0
    %108 = vmatpush2.bf16.msra.mxu0 0
    %109 = vmatprep.subr.bf16.mxu0 0
    %110 = vmatpush2.bf16.msra.mxu0 0
    %111 = vmatprep.subr.bf16.mxu0 0
    %112 = vmatpush2.bf16.msra.mxu0 0
    %113 = vmatprep.subr.bf16.mxu0 0
    %114 = vmatpush2.bf16.msra.mxu0 0
    %115 = vmatprep.subr.bf16.mxu0 0
    %116 = vmatpush2.bf16.msra.mxu0 0
    %117 = vmatprep.subr.bf16.mxu0 0
    %118 = vmatpush2.bf16.msra.mxu0 0
    %119 = vmatprep.mubr.bf16.mxu0 0
    %120 = vmatmul.mubr.bf16.gmra.mxu0 %v85
    %v121 = vpop.f32.mrf.mxu0
    %v122 = vadd.f32 %v64, %v121
    %v123 = vpop.f32.mrf.mxu0
    %v124 = vpop.f32.mrf.mxu0
    %v125 = vadd.f32 %v64, %v124
    %v126 = vpop.f32.mrf.mxu0
    %127 = vdwg.mxu0
    %v128 = vld [vmem:[#allocation2] sm:$0xff]
    %v129 = vld [vmem:[#allocation2 + $0x8] sm:$0xff]
    %130 = vmax.xlane.f32.xlu0 %v122
    %v131 = vpop.xlane.xlu0 %130
    %132 = vmax.xlane.f32.xlu0 %v125
    %v133 = vpop.xlane.xlu0 %132
    %v134 = vmax.f32 %v128, %v131
    %v135 = vmax.f32 %v129, %v133
    %v136 = vld [vmem:[#allocation3] sm:$0xff]
    %v137 = vld [vmem:[#allocation3 + $0x8] sm:$0xff]
    %v138 = vsub.f32 %v128, %v134
    %v139 = vsub.f32 %v129, %v135
    %v140 = vmul.f32 %v138, 1.442695
    %v141 = vpow.pop %v140
    %v142 = vmul.f32 %v139, 1.442695
    %v143 = vpow.pop %v142
    %v144 = vmul.f32 %v136, %v141
    %v145 = vmul.f32 %v137, %v143
    %147 = vset.pattern.permute.xlu0 0
    %148 = vperm.xlu0 %147, %v134
    %v149 = vpop.permute.xlu0 %148
    %152 = vset.pattern.permute.xlu0 0
    %153 = vperm.xlu0 %152, %v135
    %v154 = vpop.permute.xlu0 %153
    %v156 = vsub.f32 %v122, %v149
    %v157 = vsub.f32 %v125, %v154
    %v158 = vmul.f32 %v156, 1.442695
    %v159 = vpow.pop %v158
    %v160 = vmul.f32 %v157, 1.442695
    %v161 = vpow.pop %v160
    %162 = vadd.xlane.f32.xlu0 %v159
    %v163 = vpop.xlane.xlu0 %162
    %164 = vadd.xlane.f32.xlu0 %v161
    %v165 = vpop.xlane.xlu0 %164
    %v166 = vadd.f32 %v144, %v163
    %v167 = vadd.f32 %v145, %v165
    %vm168 = vcmask 7168
    %169 = vst.msk [vmem:[#allocation3] sm:$0xff] %vm168, %v166
    %170 = vst.msk [vmem:[#allocation3 + $0x8] sm:$0xff] %vm168, %v167
    %171 = vst.msk [vmem:[#allocation2] sm:$0xff] %vm168, %v134
    %172 = vst.msk [vmem:[#allocation2 + $0x8] sm:$0xff] %vm168, %v135
    %v173 = vld [vmem:[#allocation2] sm:$0xff]
    %v174 = vld [vmem:[#allocation2 + $0x8] sm:$0xff]
    %v175 = vld [vmem:[#allocation3] sm:$0xff]
    %v176 = vld [vmem:[#allocation3 + $0x8] sm:$0xff]
    %v177 = vlog2.pop %v175
    %v178 = vmul.f32 %v177, 0.6931472
    %v179 = vlog2.pop %v176
    %v180 = vmul.f32 %v179, 0.6931472
    %v181 = vadd.f32 %v173, %v178
    %v182 = vadd.f32 %v174, %v180
    %184 = vset.pattern.permute.xlu0 0
    %185 = vperm.xlu0 %184, %v181
    %v186 = vpop.permute.xlu0 %185
    %189 = vset.pattern.permute.xlu0 0
    %190 = vperm.xlu0 %189, %v182
    %v191 = vpop.permute.xlu0 %190
    %v193 = vsub.f32 %v122, %v186
    %v194 = vsub.f32 %v125, %v191
    %195 = vst [vmem:[#allocation9] sm:$0xff] %v193
    %196 = vst [vmem:[#allocation9 + $0x8] sm:$0xff] %v194
    // Predicated region
    $region26: #{tpu_custom_call.1} parent=1 // pred_check
      _
    $region27: #{tpu_custom_call.1} parent=1 // pred_check_branch
      %198 = sbr.rel (0) target = $region29
    $region28: #{tpu_custom_call.1} parent=1 // pred_region
      %s200 = ssub.s32 256, 256
      %201 = vsyncadd [#allocation6], %s200
      %s202 = sshll.u32 [#allocation9], 4
      %s203 = int_to_ptr.vmem [resolvable:$true] %s202
      %208 = dma.vmem_to_hbm [thread:$0]  %s203, 256, %s3, [#allocation6], 128, 128, 8
    $region29: #{tpu_custom_call.1} parent=1 // pred_fallthru
      _
    // Predicated region
    $region30: #{tpu_custom_call.1} parent=1 // pred_check
      _
    $region31: #{tpu_custom_call.1} parent=1 // pred_check_branch
      %210 = sbr.rel (0) target = $region33
    $region32: #{tpu_custom_call.1} parent=1 // pred_region
      %211 = dma.done [#allocation6], 256
    $region33: #{tpu_custom_call.1} parent=1 // pred_fallthru
      _
    %212 = vsyncpa [#allocation5], 1
    %213 = vsyncpa [#allocation8], 1
    %214 = vsyncpa [#allocation6], 1

</llo_original>
